<compile_context>
chip_gen: v5e
topology: v5e:2x2
jax: 0.10.0
libtpu: 0.0.40
codegen_flags: <defaults>
</compile_context>

<pallas_src>
import functools

import jax
import jax.numpy as jnp
from jax.experimental import pallas as pl
from jax.experimental.pallas import tpu as pltpu


def _round_up(x, m):
    return ((x + m - 1) // m) * m


def adapter_kernel(x_ref, wd_ref, bd_ref, wu_ref, bu_ref, o_ref):
    # x_ref: (tm, D), wd_ref: (D, A_pad), bd_ref: (1, A_pad),
    # wu_ref: (A_pad, D), bu_ref: (1, D), o_ref: (tm, D)
    x = x_ref[...]
    xm = x.astype(wd_ref.dtype)  # matmul input dtype (f32 or bf16)
    # down projection (accumulate in f32) + bias + ReLU
    h = jnp.dot(xm, wd_ref[...], preferred_element_type=jnp.float32)
    h = jnp.maximum(h + bd_ref[...], 0.0)
    # up projection (accumulate in f32) + bias
    y = jnp.dot(h.astype(wu_ref.dtype), wu_ref[...],
                preferred_element_type=jnp.float32)
    y = y + bu_ref[...]
    # residual add in f32, cast to output dtype
    o_ref[...] = (x.astype(jnp.float32) + y).astype(o_ref.dtype)


def adapter_forward(x, w_down, b_down, w_up, b_up, *, tm=512, matmul_dtype=None):
    """x: [B, S, D]; w_down: [D, A]; b_down: [A]; w_up: [A, D]; b_up: [D].

    matmul_dtype: set to jnp.bfloat16 on v5e (or to trade precision for HBM
    bandwidth on v6e/v7x). Residual path & accumulation stay in f32.
    """
    B, S, D = x.shape
    A = w_down.shape[1]
    N = B * S
    dtype = x.dtype
    mm_dtype = dtype if matmul_dtype is None else matmul_dtype

    # --- pad adapter dim to a lane-dense multiple of 128 (zeros => exact math) ---
    A_pad = _round_up(A, 128)
    if A_pad != A:
        w_down_p = jnp.zeros((D, A_pad), dtype=mm_dtype).at[:, :A].set(
            w_down.astype(mm_dtype))
        b_down_p = jnp.zeros((1, A_pad), dtype=jnp.float32).at[:, :A].set(
            b_down.astype(jnp.float32).reshape(1, A))
        w_up_p = jnp.zeros((A_pad, D), dtype=mm_dtype).at[:A, :].set(
            w_up.astype(mm_dtype))
    else:
        w_down_p = w_down.astype(mm_dtype)
        b_down_p = b_down.astype(jnp.float32).reshape(1, A_pad)
        w_up_p = w_up.astype(mm_dtype)
    b_up_p = b_up.astype(jnp.float32).reshape(1, D)

    # --- pick the row tile: multiple of 8, never bigger than (padded) N ---
    tm_eff = max(8, min(_round_up(tm, 8), _round_up(N, 8)))
    N_pad = _round_up(N, tm_eff)

    x2 = x.reshape(N, D)
    if N_pad != N:
        x2 = jnp.zeros((N_pad, D), dtype=dtype).at[:N, :].set(x2)

    # --- VMEM budget: x & out double-buffered + resident weights + f32 temps ---
    itemsize = jnp.dtype(dtype).itemsize
    per_step = (2 * tm_eff * D * itemsize            # x tile, double-buffered
                + 2 * tm_eff * D * itemsize          # out tile, double-buffered
                + (D * A_pad + A_pad * D) * jnp.dtype(mm_dtype).itemsize  # weights
                + (A_pad + D) * 4                    # biases
                + tm_eff * (A_pad + 2 * D) * 4)      # f32 intermediates h / y / x_f32
    vmem_limit = int(min(max(2 * per_step, 32 << 20), 48 << 20))

    cost = pl.CostEstimate(
        flops=4 * N * D * A,                         # two matmuls, 2*N*D*A each
        transcendentals=0,
        bytes_accessed=2 * N * D * itemsize
        + 2 * D * A * jnp.dtype(mm_dtype).itemsize
        + (A + D) * 4,
    )

    grid = (N_pad // tm_eff,)
    out2 = pl.pallas_call(
        adapter_kernel,
        out_shape=jax.ShapeDtypeStruct((N_pad, D), dtype),
        grid_spec=pltpu.PrefetchScalarGridSpec(
            num_scalar_prefetch=0,
            grid=grid,
            in_specs=[
                pl.BlockSpec((tm_eff, D), lambda i: (i, 0)),   # x row tile (pipelined)
                pl.BlockSpec((D, A_pad), lambda i: (0, 0)),    # down weight (resident)
                pl.BlockSpec((1, A_pad), lambda i: (0, 0)),    # down bias
                pl.BlockSpec((A_pad, D), lambda i: (0, 0)),    # up weight (resident)
                pl.BlockSpec((1, D), lambda i: (0, 0)),        # up bias
            ],
            out_specs=pl.BlockSpec((tm_eff, D), lambda i: (i, 0)),
        ),
        compiler_params=pltpu.CompilerParams(
            dimension_semantics=("parallel",),      # megacore-shardable on v7x
            vmem_limit_bytes=vmem_limit,
        ),
        cost_estimate=cost,
    )(x2, w_down_p, b_down_p, w_up_p, b_up_p)

    return out2[:N].reshape(B, S, D)


def adapter_reference(x, w_down, b_down, w_up, b_up):
    h = jnp.maximum(x @ w_down + b_down, 0.0)
    return x + (h @ w_up + b_up)


if __name__ == "__main__":
    # Matches AdapterModule(input_dim=768, adapter_dim=64, activation='relu')
    input_dim, adapter_dim = 768, 64
    batch, seq = 2, 8

    key = jax.random.PRNGKey(0)
    kx, kd, ku = jax.random.split(key, 3)

    x = jax.random.normal(kx, (batch, seq, input_dim), dtype=jnp.float32)

    # Deterministic init mirroring nn.init.normal_(std=0.02) / zeros_ for biases.
    # PyTorch Linear stores weight as [out, in] and computes x @ W.T; we store
    # the transposed layout [in, out] directly.
    w_down = 0.02 * jax.random.normal(kd, (input_dim, adapter_dim), dtype=jnp.float32)
    b_down = jnp.zeros((adapter_dim,), dtype=jnp.float32)
    w_up = 0.02 * jax.random.normal(ku, (adapter_dim, input_dim), dtype=jnp.float32)
    b_up = jnp.zeros((input_dim,), dtype=jnp.float32)

    fwd = jax.jit(functools.partial(adapter_forward, tm=512))
    out = fwd(x, w_down, b_down, w_up, b_up)
    out = jax.block_until_ready(out)

    ref = adapter_reference(x, w_down, b_down, w_up, b_up)
    assert out.shape == (batch, seq, input_dim)
    assert jnp.allclose(out, ref, atol=1e-4, rtol=1e-4)

    print("KERNEL_OK")
</pallas_src>

<mosaic_0001>
module attributes {stable_mosaic.version = 11 : i64} {
  func.func @adapter_kernel(%arg0: i32, %arg1: memref<16x768xf32, #tpu.memory_space<vmem>>, %arg2: memref<768x128xf32, #tpu.memory_space<vmem>>, %arg3: memref<1x128xf32, #tpu.memory_space<vmem>>, %arg4: memref<128x768xf32, #tpu.memory_space<vmem>>, %arg5: memref<1x768xf32, #tpu.memory_space<vmem>>, %arg6: memref<16x768xf32, #tpu.memory_space<vmem>>) attributes {dimension_semantics = [#tpu.dimension_semantics<parallel>], iteration_bounds = array<i64: 1>, scalar_prefetch = 0 : i64, scratch_operands = 0 : i64, tpu.core_type = #tpu.core_type<tc>, window_params = [{transform_indices = @transform_0, window_bounds = array<i64: 16, 768>}, {pipeline_mode = #tpu.pipeline_mode<synchronous>, transform_indices = @transform_1, window_bounds = array<i64: 768, 128>}, {pipeline_mode = #tpu.pipeline_mode<synchronous>, transform_indices = @transform_2, window_bounds = array<i64: 1, 128>}, {pipeline_mode = #tpu.pipeline_mode<synchronous>, transform_indices = @transform_3, window_bounds = array<i64: 128, 768>}, {pipeline_mode = #tpu.pipeline_mode<synchronous>, transform_indices = @transform_4, window_bounds = array<i64: 1, 768>}, {transform_indices = @transform_5, window_bounds = array<i64: 16, 768>}]} {
    %c0 = arith.constant 0 : index
    %c0_0 = arith.constant 0 : index
    %0 = vector.load %arg1[%c0, %c0_0] : memref<16x768xf32, #tpu.memory_space<vmem>>, vector<16x768xf32>
    %c0_1 = arith.constant 0 : index
    %c0_2 = arith.constant 0 : index
    %1 = vector.load %arg2[%c0_1, %c0_2] : memref<768x128xf32, #tpu.memory_space<vmem>>, vector<768x128xf32>
    %cst = arith.constant dense<0.000000e+00> : vector<16x128xf32>
    %2 = tpu.matmul %0, %1, %cst {dimension_numbers = #tpu.dot_dimension_numbers<[1], [0], [0], [1], [0, 0, 1, 1], [], []>} : vector<16x768xf32>, vector<768x128xf32>, vector<16x128xf32> -> vector<16x128xf32>
    %c0_3 = arith.constant 0 : index
    %c0_4 = arith.constant 0 : index
    %3 = vector.load %arg3[%c0_3, %c0_4] : memref<1x128xf32, #tpu.memory_space<vmem>>, vector<1x128xf32>
    %4 = vector.broadcast %3 : vector<1x128xf32> to vector<16x128xf32>
    %5 = arith.addf %2, %4 : vector<16x128xf32>
    %cst_5 = arith.constant 0.000000e+00 : f32
    %6 = vector.broadcast %cst_5 : f32 to vector<16x128xf32>
    %7 = arith.maximumf %5, %6 : vector<16x128xf32>
    %c0_6 = arith.constant 0 : index
    %c0_7 = arith.constant 0 : index
    %8 = vector.load %arg4[%c0_6, %c0_7] : memref<128x768xf32, #tpu.memory_space<vmem>>, vector<128x768xf32>
    %cst_8 = arith.constant dense<0.000000e+00> : vector<16x768xf32>
    %9 = tpu.matmul %7, %8, %cst_8 {dimension_numbers = #tpu.dot_dimension_numbers<[1], [0], [0], [1], [0, 0, 1, 1], [], []>} : vector<16x128xf32>, vector<128x768xf32>, vector<16x768xf32> -> vector<16x768xf32>
    %c0_9 = arith.constant 0 : index
    %c0_10 = arith.constant 0 : index
    %10 = vector.load %arg5[%c0_9, %c0_10] : memref<1x768xf32, #tpu.memory_space<vmem>>, vector<1x768xf32>
    %11 = vector.broadcast %10 : vector<1x768xf32> to vector<16x768xf32>
    %12 = arith.addf %9, %11 : vector<16x768xf32>
    %13 = arith.addf %0, %12 : vector<16x768xf32>
    %c0_11 = arith.constant 0 : index
    %c0_12 = arith.constant 0 : index
    %14 = vector.load %arg6[%c0_11, %c0_12] : memref<16x768xf32, #tpu.memory_space<vmem>>, vector<16x768xf32>
    tpu.vector_store %arg6[%c0_11, %c0_12], %13 {strides = array<i32>} : memref<16x768xf32, #tpu.memory_space<vmem>>, vector<16x768xf32>,
    return
  }
  func.func @transform_0(%arg0: i32) -> (i32, i32) {
    %c0_i32 = arith.constant 0 : i32
    %c0_i32_0 = arith.constant 0 : i32
    return %arg0, %c0_i32 : i32, i32
  }
  func.func @transform_1(%arg0: i32) -> (i32, i32) {
    %c0_i32 = arith.constant 0 : i32
    %c0_i32_0 = arith.constant 0 : i32
    %c0_i32_1 = arith.constant 0 : i32
    return %c0_i32, %c0_i32_0 : i32, i32
  }
  func.func @transform_2(%arg0: i32) -> (i32, i32) {
    %c0_i32 = arith.constant 0 : i32
    %c0_i32_0 = arith.constant 0 : i32
    %c0_i32_1 = arith.constant 0 : i32
    return %c0_i32, %c0_i32_0 : i32, i32
  }
  func.func @transform_3(%arg0: i32) -> (i32, i32) {
    %c0_i32 = arith.constant 0 : i32
    %c0_i32_0 = arith.constant 0 : i32
    %c0_i32_1 = arith.constant 0 : i32
    return %c0_i32, %c0_i32_0 : i32, i32
  }
  func.func @transform_4(%arg0: i32) -> (i32, i32) {
    %c0_i32 = arith.constant 0 : i32
    %c0_i32_0 = arith.constant 0 : i32
    %c0_i32_1 = arith.constant 0 : i32
    return %c0_i32, %c0_i32_0 : i32, i32
  }
  func.func @transform_5(%arg0: i32) -> (i32, i32) {
    %c0_i32 = arith.constant 0 : i32
    %c0_i32_0 = arith.constant 0 : i32
    return %arg0, %c0_i32 : i32, i32
  }
}

</mosaic_0001>

<llo_original>
// kernel: adapter_forward.1
$region0: #{adapter_forward.1}
  #allocation0 [shape = 'u32[]', space=smem, size = 0x4, offset = 0x4, fixed_abs, tag = 'smem constant byte address 0x4 - core index']
  #allocation1 [shape = 'u32[72,128]{1,0:T(1,128)}', space=vmem, size = 0x9000, scoped, tag = 'internal scratch']
  %s0 = inlined_call_operand.vmem [shape: f32[16,768], index: 0, kind: input, shape index: {}]
  %s1 = inlined_call_operand.vmem [shape: f32[768,128], index: 1, kind: input, shape index: {}]
  %s2 = inlined_call_operand.vmem [shape: f32[1,128], index: 2, kind: input, shape index: {}]
  %s3 = inlined_call_operand.vmem [shape: f32[128,768], index: 3, kind: input, shape index: {}]
  %s4 = inlined_call_operand.vmem [shape: f32[1,768], index: 4, kind: input, shape index: {}]
  %s5 = inlined_call_operand.hbm [shape: f32[16,768], index: 5, kind: output, shape index: {}]
  %s6 = sld [smem:[#allocation0]]
  $region30: #{adapter_forward.1} parent=0
    _
  %s8 = ssub.s32 1, %s6
  %s9 = scalar_select 0, %s8, %s6
  $region1: #{adapter_forward.1} parent=0
    #allocation2 [shape = 'u8[49152]{0}', space=vmem, size = 0xc000, scoped, tag = 'output window, operand 0, single buffered']
    #allocation3 [shape = 's32[1]{0}', space=sflag, size = 0x4, scoped, tag = 'scoped memory for adapter_forward.1']
    %10 = vsyncpa [#allocation3], 0
    // Predicated region
    $region2: #{adapter_forward.1} parent=1 // pred_check
      _
    $region3: #{adapter_forward.1} parent=1 // pred_check_branch
      %12 = sbr.rel (0) target = $region5
    $region4: #{adapter_forward.1} parent=1 // pred_region
      _
    $region5: #{adapter_forward.1} parent=1 // pred_fallthru
      _
    // Predicated region
    $region6: #{adapter_forward.1} parent=1 // pred_check
      _
    $region7: #{adapter_forward.1} parent=1 // pred_check_branch
      %14 = sbr.rel (0) target = $region9
    $region8: #{adapter_forward.1} parent=1 // pred_region
      _
    $region9: #{adapter_forward.1} parent=1 // pred_fallthru
      _
    // Predicated region
    $region10: #{adapter_forward.1} parent=1 // pred_check
      _
    $region11: #{adapter_forward.1} parent=1 // pred_check_branch
      %16 = sbr.rel (0) target = $region13
    $region12: #{adapter_forward.1} parent=1 // pred_region
      _
    $region13: #{adapter_forward.1} parent=1 // pred_fallthru
      _
    // Predicated region
    $region14: #{adapter_forward.1} parent=1 // pred_check
      _
    $region15: #{adapter_forward.1} parent=1 // pred_check_branch
      %18 = sbr.rel (0) target = $region17
    $region16: #{adapter_forward.1} parent=1 // pred_region
      _
    $region17: #{adapter_forward.1} parent=1 // pred_fallthru
      _
    // Predicated region
    $region18: #{adapter_forward.1} parent=1 // pred_check
      _
    $region19: #{adapter_forward.1} parent=1 // pred_check_branch
      %20 = sbr.rel (0) target = $region21
    $region20: #{adapter_forward.1} parent=1 // pred_region
      _
    $region21: #{adapter_forward.1} parent=1 // pred_fallthru
      _
    %v21 = vld [vmem:[%s0] sm:$0xff]
    %v22 = vld [vmem:[%s0 + $0x8] sm:$0xff]
    %v23 = vld [vmem:[%s0 + $0x10] sm:$0xff]
    %v24 = vld [vmem:[%s0 + $0x18] sm:$0xff]
    %v25 = vld [vmem:[%s0 + $0x20] sm:$0xff]
    %v26 = vld [vmem:[%s0 + $0x28] sm:$0xff]
    %v27 = vld [vmem:[%s0 + $0x30] sm:$0xff]
    %v28 = vld [vmem:[%s0 + $0x38] sm:$0xff]
    %v29 = vld [vmem:[%s0 + $0x40] sm:$0xff]
    %v30 = vld [vmem:[%s0 + $0x48] sm:$0xff]
    %v31 = vld [vmem:[%s0 + $0x50] sm:$0xff]
    %v32 = vld [vmem:[%s0 + $0x58] sm:$0xff]
    %v33 = vld [vmem:[%s1] sm:$0xff]
    %v34 = vld [vmem:[%s1 + $0x8] sm:$0xff]
    %v35 = vld [vmem:[%s1 + $0x10] sm:$0xff]
    %v36 = vld [vmem:[%s1 + $0x18] sm:$0xff]
    %v37 = vld [vmem:[%s1 + $0x20] sm:$0xff]
    %v38 = vld [vmem:[%s1 + $0x28] sm:$0xff]
    %v39 = vld [vmem:[%s1 + $0x30] sm:$0xff]
    %v40 = vld [vmem:[%s1 + $0x38] sm:$0xff]
    %v41 = vld [vmem:[%s1 + $0x40] sm:$0xff]
    %v42 = vld [vmem:[%s1 + $0x48] sm:$0xff]
    %v43 = vld [vmem:[%s1 + $0x50] sm:$0xff]
    %v44 = vld [vmem:[%s1 + $0x58] sm:$0xff]
    %v45 = vld [vmem:[%s1 + $0x60] sm:$0xff]
    %v46 = vld [vmem:[%s1 + $0x68] sm:$0xff]
    %v47 = vld [vmem:[%s1 + $0x70] sm:$0xff]
    %v48 = vld [vmem:[%s1 + $0x78] sm:$0xff]
    %v49 = vld [vmem:[%s1 + $0x80] sm:$0xff]
    %v50 = vld [vmem:[%s1 + $0x88] sm:$0xff]
    %v51 = vld [vmem:[%s1 + $0x90] sm:$0xff]
    %v52 = vld [vmem:[%s1 + $0x98] sm:$0xff]
    %v53 = vld [vmem:[%s1 + $0xa0] sm:$0xff]
    %v54 = vld [vmem:[%s1 + $0xa8] sm:$0xff]
    %v55 = vld [vmem:[%s1 + $0xb0] sm:$0xff]
    %v56 = vld [vmem:[%s1 + $0xb8] sm:$0xff]
    %v57 = vld [vmem:[%s1 + $0xc0] sm:$0xff]
    %v58 = vld [vmem:[%s1 + $0xc8] sm:$0xff]
    %v59 = vld [vmem:[%s1 + $0xd0] sm:$0xff]
    %v60 = vld [vmem:[%s1 + $0xd8] sm:$0xff]
    %v61 = vld [vmem:[%s1 + $0xe0] sm:$0xff]
    %v62 = vld [vmem:[%s1 + $0xe8] sm:$0xff]
    %v63 = vld [vmem:[%s1 + $0xf0] sm:$0xff]
    %v64 = vld [vmem:[%s1 + $0xf8] sm:$0xff]
    %v65 = vld [vmem:[%s1 + $0x100] sm:$0xff]
    %v66 = vld [vmem:[%s1 + $0x108] sm:$0xff]
    %v67 = vld [vmem:[%s1 + $0x110] sm:$0xff]
    %v68 = vld [vmem:[%s1 + $0x118] sm:$0xff]
    %v69 = vld [vmem:[%s1 + $0x120] sm:$0xff]
    %v70 = vld [vmem:[%s1 + $0x128] sm:$0xff]
    %v71 = vld [vmem:[%s1 + $0x130] sm:$0xff]
    %v72 = vld [vmem:[%s1 + $0x138] sm:$0xff]
    %v73 = vld [vmem:[%s1 + $0x140] sm:$0xff]
    %v74 = vld [vmem:[%s1 + $0x148] sm:$0xff]
    %v75 = vld [vmem:[%s1 + $0x150] sm:$0xff]
    %v76 = vld [vmem:[%s1 + $0x158] sm:$0xff]
    %v77 = vld [vmem:[%s1 + $0x160] sm:$0xff]
    %v78 = vld [vmem:[%s1 + $0x168] sm:$0xff]
    %v79 = vld [vmem:[%s1 + $0x170] sm:$0xff]
    %v80 = vld [vmem:[%s1 + $0x178] sm:$0xff]
    %v81 = vld [vmem:[%s1 + $0x180] sm:$0xff]
    %v82 = vld [vmem:[%s1 + $0x188] sm:$0xff]
    %v83 = vld [vmem:[%s1 + $0x190] sm:$0xff]
    %v84 = vld [vmem:[%s1 + $0x198] sm:$0xff]
    %v85 = vld [vmem:[%s1 + $0x1a0] sm:$0xff]
    %v86 = vld [vmem:[%s1 + $0x1a8] sm:$0xff]
    %v87 = vld [vmem:[%s1 + $0x1b0] sm:$0xff]
    %v88 = vld [vmem:[%s1 + $0x1b8] sm:$0xff]
    %v89 = vld [vmem:[%s1 + $0x1c0] sm:$0xff]
    %v90 = vld [vmem:[%s1 + $0x1c8] sm:$0xff]
    %v91 = vld [vmem:[%s1 + $0x1d0] sm:$0xff]
    %v92 = vld [vmem:[%s1 + $0x1d8] sm:$0xff]
    %v93 = vld [vmem:[%s1 + $0x1e0] sm:$0xff]
    %v94 = vld [vmem:[%s1 + $0x1e8] sm:$0xff]
    %v95 = vld [vmem:[%s1 + $0x1f0] sm:$0xff]
    %v96 = vld [vmem:[%s1 + $0x1f8] sm:$0xff]
    %v97 = vld [vmem:[%s1 + $0x200] sm:$0xff]
    %v98 = vld [vmem:[%s1 + $0x208] sm:$0xff]
    %v99 = vld [vmem:[%s1 + $0x210] sm:$0xff]
    %v100 = vld [vmem:[%s1 + $0x218] sm:$0xff]
    %v101 = vld [vmem:[%s1 + $0x220] sm:$0xff]
    %v102 = vld [vmem:[%s1 + $0x228] sm:$0xff]
    %v103 = vld [vmem:[%s1 + $0x230] sm:$0xff]
    %v104 = vld [vmem:[%s1 + $0x238] sm:$0xff]
    %v105 = vld [vmem:[%s1 + $0x240] sm:$0xff]
    %v106 = vld [vmem:[%s1 + $0x248] sm:$0xff]
    %v107 = vld [vmem:[%s1 + $0x250] sm:$0xff]
    %v108 = vld [vmem:[%s1 + $0x258] sm:$0xff]
    %v109 = vld [vmem:[%s1 + $0x260] sm:$0xff]
    %v110 = vld [vmem:[%s1 + $0x268] sm:$0xff]
    %v111 = vld [vmem:[%s1 + $0x270] sm:$0xff]
    %v112 = vld [vmem:[%s1 + $0x278] sm:$0xff]
    %v113 = vld [vmem:[%s1 + $0x280] sm:$0xff]
    %v114 = vld [vmem:[%s1 + $0x288] sm:$0xff]
    %v115 = vld [vmem:[%s1 + $0x290] sm:$0xff]
    %v116 = vld [vmem:[%s1 + $0x298] sm:$0xff]
    %v117 = vld [vmem:[%s1 + $0x2a0] sm:$0xff]
    %v118 = vld [vmem:[%s1 + $0x2a8] sm:$0xff]
    %v119 = vld [vmem:[%s1 + $0x2b0] sm:$0xff]
    %v120 = vld [vmem:[%s1 + $0x2b8] sm:$0xff]
    %v121 = vld [vmem:[%s1 + $0x2c0] sm:$0xff]
    %v122 = vld [vmem:[%s1 + $0x2c8] sm:$0xff]
    %v123 = vld [vmem:[%s1 + $0x2d0] sm:$0xff]
    %v124 = vld [vmem:[%s1 + $0x2d8] sm:$0xff]
    %v125 = vld [vmem:[%s1 + $0x2e0] sm:$0xff]
    %v126 = vld [vmem:[%s1 + $0x2e8] sm:$0xff]
    %v127 = vld [vmem:[%s1 + $0x2f0] sm:$0xff]
    %v128 = vld [vmem:[%s1 + $0x2f8] sm:$0xff]
    %v129 = vld [vmem:[%s2] sm:$0x1]
    %v131 = vperm.slane %v129, 0
    %133 = vmatpush.msra.mxu0 %v48
    %134 = vmatpush.msra.mxu0 %v47
    %135 = vmatpush.msra.mxu0 %v46
    %136 = vmatpush.msra.mxu0 %v45
    %137 = vmatpush.msra.mxu0 %v44
    %138 = vmatpush.msra.mxu0 %v43
    %139 = vmatpush.msra.mxu0 %v42
    %140 = vmatpush.msra.mxu0 %v41
    %141 = vmatpush.msra.mxu0 %v40
    %142 = vmatpush.msra.mxu0 %v39
    %143 = vmatpush.msra.mxu0 %v38
    %144 = vmatpush.msra.mxu0 %v37
    %145 = vmatpush.msra.mxu0 %v36
    %146 = vmatpush.msra.mxu0 %v35
    %147 = vmatpush.msra.mxu0 %v34
    %148 = vmatpush.msra.mxu0 %v33
    %149 = vmatmul.f32.gmra.mxu0 %v21
    %v150 = vpop.f32.mrf.mxu0
    %v151 = vadd.f32 %v131, %v150
    %152 = vmatmul.f32.gmra.mxu0 %v27
    %v153 = vpop.f32.mrf.mxu0
    %v154 = vadd.f32 %v131, %v153
    %155 = vdwg.mxu0
    %156 = vmatpush.msra.mxu0 %v64
    %157 = vmatpush.msra.mxu0 %v63
    %158 = vmatpush.msra.mxu0 %v62
    %159 = vmatpush.msra.mxu0 %v61
    %160 = vmatpush.msra.mxu0 %v60
    %161 = vmatpush.msra.mxu0 %v59
    %162 = vmatpush.msra.mxu0 %v58
    %163 = vmatpush.msra.mxu0 %v57
    %164 = vmatpush.msra.mxu0 %v56
    %165 = vmatpush.msra.mxu0 %v55
    %166 = vmatpush.msra.mxu0 %v54
    %167 = vmatpush.msra.mxu0 %v53
    %168 = vmatpush.msra.mxu0 %v52
    %169 = vmatpush.msra.mxu0 %v51
    %170 = vmatpush.msra.mxu0 %v50
    %171 = vmatpush.msra.mxu0 %v49
    %172 = vmatmul.f32.gmra.mxu0 %v22
    %v173 = vpop.f32.mrf.mxu0
    %v174 = vadd.f32 %v151, %v173
    %175 = vmatmul.f32.gmra.mxu0 %v28
    %v176 = vpop.f32.mrf.mxu0
    %v177 = vadd.f32 %v154, %v176
    %178 = vdwg.mxu0
    %179 = vmatpush.msra.mxu0 %v80
    %180 = vmatpush.msra.mxu0 %v79
    %181 = vmatpush.msra.mxu0 %v78
    %182 = vmatpush.msra.mxu0 %v77
    %183 = vmatpush.msra.mxu0 %v76
    %184 = vmatpush.msra.mxu0 %v75
    %185 = vmatpush.msra.mxu0 %v74
    %186 = vmatpush.msra.mxu0 %v73
    %187 = vmatpush.msra.mxu0 %v72
    %188 = vmatpush.msra.mxu0 %v71
    %189 = vmatpush.msra.mxu0 %v70
    %190 = vmatpush.msra.mxu0 %v69
    %191 = vmatpush.msra.mxu0 %v68
    %192 = vmatpush.msra.mxu0 %v67
    %193 = vmatpush.msra.mxu0 %v66
    %194 = vmatpush.msra.mxu0 %v65
    %195 = vmatmul.f32.gmra.mxu0 %v23
    %v196 = vpop.f32.mrf.mxu0
    %v197 = vadd.f32 %v174, %v196
    %198 = vmatmul.f32.gmra.mxu0 %v29
    %v199 = vpop.f32.mrf.mxu0
    %v200 = vadd.f32 %v177, %v199
    %201 = vdwg.mxu0
    %202 = vmatpush.msra.mxu0 %v96
    %203 = vmatpush.msra.mxu0 %v95
    %204 = vmatpush.msra.mxu0 %v94
    %205 = vmatpush.msra.mxu0 %v93
    %206 = vmatpush.msra.mxu0 %v92
    %207 = vmatpush.msra.mxu0 %v91
    %208 = vmatpush.msra.mxu0 %v90
    %209 = vmatpush.msra.mxu0 %v89
    %210 = vmatpush.msra.mxu0 %v88
    %211 = vmatpush.msra.mxu0 %v87
    %212 = vmatpush.msra.mxu0 %v86
    %213 = vmatpush.msra.mxu0 %v85
    %214 = vmatpush.msra.mxu0 %v84
    %215 = vmatpush.msra.mxu0 %v83
    %216 = vmatpush.msra.mxu0 %v82
    %217 = vmatpush.msra.mxu0 %v81
    %218 = vmatmul.f32.gmra.mxu0 %v24
    %v219 = vpop.f32.mrf.mxu0
    %v220 = vadd.f32 %v197, %v219
    %221 = vmatmul.f32.gmra.mxu0 %v30
    %v222 = vpop.f32.mrf.mxu0
    %v223 = vadd.f32 %v200, %v222
    %224 = vdwg.mxu0
    %225 = vmatpush.msra.mxu0 %v112
    %226 = vmatpush.msra.mxu0 %v111
    %227 = vmatpush.msra.mxu0 %v110
    %228 = vmatpush.msra.mxu0 %v109
    %229 = vmatpush.msra.mxu0 %v108
    %230 = vmatpush.msra.mxu0 %v107
    %231 = vmatpush.msra.mxu0 %v106
    %232 = vmatpush.msra.mxu0 %v105
    %233 = vmatpush.msra.mxu0 %v104
    %234 = vmatpush.msra.mxu0 %v103
    %235 = vmatpush.msra.mxu0 %v102
    %236 = vmatpush.msra.mxu0 %v101
    %237 = vmatpush.msra.mxu0 %v100
    %238 = vmatpush.msra.mxu0 %v99
    %239 = vmatpush.msra.mxu0 %v98
    %240 = vmatpush.msra.mxu0 %v97
    %241 = vmatmul.f32.gmra.mxu0 %v25
    %v242 = vpop.f32.mrf.mxu0
    %v243 = vadd.f32 %v220, %v242
    %244 = vmatmul.f32.gmra.mxu0 %v31
    %v245 = vpop.f32.mrf.mxu0
    %v246 = vadd.f32 %v223, %v245
    %247 = vdwg.mxu0
    %248 = vmatpush.msra.mxu0 %v128
    %249 = vmatpush.msra.mxu0 %v127
    %250 = vmatpush.msra.mxu0 %v126
    %251 = vmatpush.msra.mxu0 %v125
    %252 = vmatpush.msra.mxu0 %v124
    %253 = vmatpush.msra.mxu0 %v123
    %254 = vmatpush.msra.mxu0 %v122
    %255 = vmatpush.msra.mxu0 %v121
    %256 = vmatpush.msra.mxu0 %v120
    %257 = vmatpush.msra.mxu0 %v119
    %258 = vmatpush.msra.mxu0 %v118
    %259 = vmatpush.msra.mxu0 %v117
    %260 = vmatpush.msra.mxu0 %v116
    %261 = vmatpush.msra.mxu0 %v115
    %262 = vmatpush.msra.mxu0 %v114
    %263 = vmatpush.msra.mxu0 %v113
    %264 = vmatmul.f32.gmra.mxu0 %v26
    %v265 = vpop.f32.mrf.mxu0
    %v266 = vadd.f32 %v243, %v265
    %267 = vmatmul.f32.gmra.mxu0 %v32
    %v268 = vpop.f32.mrf.mxu0
    %v269 = vadd.f32 %v246, %v268
    %270 = vdwg.mxu0
    %v271 = vmax.f32 %v266, 0.0
    %v272 = vmax.f32 %v269, 0.0
    %v273 = vld [vmem:[%s3] sm:$0xff]
    %v274 = vld [vmem:[%s3 + $0x8] sm:$0xff]
    %v275 = vld [vmem:[%s3 + $0x10] sm:$0xff]
    %v276 = vld [vmem:[%s3 + $0x18] sm:$0xff]
    %v277 = vld [vmem:[%s3 + $0x20] sm:$0xff]
    %v278 = vld [vmem:[%s3 + $0x28] sm:$0xff]
    %v279 = vld [vmem:[%s3 + $0x30] sm:$0xff]
    %v280 = vld [vmem:[%s3 + $0x38] sm:$0xff]
    %v281 = vld [vmem:[%s3 + $0x40] sm:$0xff]
    %v282 = vld [vmem:[%s3 + $0x48] sm:$0xff]
    %v283 = vld [vmem:[%s3 + $0x50] sm:$0xff]
    %v284 = vld [vmem:[%s3 + $0x58] sm:$0xff]
    %v285 = vld [vmem:[%s3 + $0x60] sm:$0xff]
    %v286 = vld [vmem:[%s3 + $0x68] sm:$0xff]
    %v287 = vld [vmem:[%s3 + $0x70] sm:$0xff]
    %v288 = vld [vmem:[%s3 + $0x78] sm:$0xff]
    %v289 = vld [vmem:[%s3 + $0x80] sm:$0xff]
    %v290 = vld [vmem:[%s3 + $0x88] sm:$0xff]
    %v291 = vld [vmem:[%s3 + $0x90] sm:$0xff]
    %v292 = vld [vmem:[%s3 + $0x98] sm:$0xff]
    %v293 = vld [vmem:[%s3 + $0xa0] sm:$0xff]
    %v294 = vld [vmem:[%s3 + $0xa8] sm:$0xff]
    %v295 = vld [vmem:[%s3 + $0xb0] sm:$0xff]
    %v296 = vld [vmem:[%s3 + $0xb8] sm:$0xff]
    %v297 = vld [vmem:[%s3 + $0xc0] sm:$0xff]
    %v298 = vld [vmem:[%s3 + $0xc8] sm:$0xff]
    %v299 = vld [vmem:[%s3 + $0xd0] sm:$0xff]
    %v300 = vld [vmem:[%s3 + $0xd8] sm:$0xff]
    %v301 = vld [vmem:[%s3 + $0xe0] sm:$0xff]
    %v302 = vld [vmem:[%s3 + $0xe8] sm:$0xff]
    %v303 = vld [vmem:[%s3 + $0xf0] sm:$0xff]
    %v304 = vld [vmem:[%s3 + $0xf8] sm:$0xff]
    %v305 = vld [vmem:[%s3 + $0x100] sm:$0xff]
    %v306 = vld [vmem:[%s3 + $0x108] sm:$0xff]
    %v307 = vld [vmem:[%s3 + $0x110] sm:$0xff]
    %v308 = vld [vmem:[%s3 + $0x118] sm:$0xff]
    %v309 = vld [vmem:[%s3 + $0x120] sm:$0xff]
    %v310 = vld [vmem:[%s3 + $0x128] sm:$0xff]
    %v311 = vld [vmem:[%s3 + $0x130] sm:$0xff]
    %v312 = vld [vmem:[%s3 + $0x138] sm:$0xff]
    %v313 = vld [vmem:[%s3 + $0x140] sm:$0xff]
    %v314 = vld [vmem:[%s3 + $0x148] sm:$0xff]
    %v315 = vld [vmem:[%s3 + $0x150] sm:$0xff]
    %v316 = vld [vmem:[%s3 + $0x158] sm:$0xff]
    %v317 = vld [vmem:[%s3 + $0x160] sm:$0xff]
    %v318 = vld [vmem:[%s3 + $0x168] sm:$0xff]
    %v319 = vld [vmem:[%s3 + $0x170] sm:$0xff]
    %v320 = vld [vmem:[%s3 + $0x178] sm:$0xff]
    %v321 = vld [vmem:[%s3 + $0x180] sm:$0xff]
    %v322 = vld [vmem:[%s3 + $0x188] sm:$0xff]
    %v323 = vld [vmem:[%s3 + $0x190] sm:$0xff]
    %v324 = vld [vmem:[%s3 + $0x198] sm:$0xff]
    %v325 = vld [vmem:[%s3 + $0x1a0] sm:$0xff]
    %v326 = vld [vmem:[%s3 + $0x1a8] sm:$0xff]
    %v327 = vld [vmem:[%s3 + $0x1b0] sm:$0xff]
    %v328 = vld [vmem:[%s3 + $0x1b8] sm:$0xff]
    %v329 = vld [vmem:[%s3 + $0x1c0] sm:$0xff]
    %v330 = vld [vmem:[%s3 + $0x1c8] sm:$0xff]
    %v331 = vld [vmem:[%s3 + $0x1d0] sm:$0xff]
    %v332 = vld [vmem:[%s3 + $0x1d8] sm:$0xff]
    %v333 = vld [vmem:[%s3 + $0x1e0] sm:$0xff]
    %v334 = vld [vmem:[%s3 + $0x1e8] sm:$0xff]
    %v335 = vld [vmem:[%s3 + $0x1f0] sm:$0xff]
    %v336 = vld [vmem:[%s3 + $0x1f8] sm:$0xff]
    %v337 = vld [vmem:[%s3 + $0x200] sm:$0xff]
    %v338 = vld [vmem:[%s3 + $0x208] sm:$0xff]
    %v339 = vld [vmem:[%s3 + $0x210] sm:$0xff]
    %v340 = vld [vmem:[%s3 + $0x218] sm:$0xff]
    %v341 = vld [vmem:[%s3 + $0x220] sm:$0xff]
    %v342 = vld [vmem:[%s3 + $0x228] sm:$0xff]
    %v343 = vld [vmem:[%s3 + $0x230] sm:$0xff]
    %v344 = vld [vmem:[%s3 + $0x238] sm:$0xff]
    %v345 = vld [vmem:[%s3 + $0x240] sm:$0xff]
    %v346 = vld [vmem:[%s3 + $0x248] sm:$0xff]
    %v347 = vld [vmem:[%s3 + $0x250] sm:$0xff]
    %v348 = vld [vmem:[%s3 + $0x258] sm:$0xff]
    %v349 = vld [vmem:[%s3 + $0x260] sm:$0xff]
    %v350 = vld [vmem:[%s3 + $0x268] sm:$0xff]
    %v351 = vld [vmem:[%s3 + $0x270] sm:$0xff]
    %v352 = vld [vmem:[%s3 + $0x278] sm:$0xff]
    %v353 = vld [vmem:[%s3 + $0x280] sm:$0xff]
    %v354 = vld [vmem:[%s3 + $0x288] sm:$0xff]
    %v355 = vld [vmem:[%s3 + $0x290] sm:$0xff]
    %v356 = vld [vmem:[%s3 + $0x298] sm:$0xff]
    %v357 = vld [vmem:[%s3 + $0x2a0] sm:$0xff]
    %v358 = vld [vmem:[%s3 + $0x2a8] sm:$0xff]
    %v359 = vld [vmem:[%s3 + $0x2b0] sm:$0xff]
    %v360 = vld [vmem:[%s3 + $0x2b8] sm:$0xff]
    %v361 = vld [vmem:[%s3 + $0x2c0] sm:$0xff]
    %v362 = vld [vmem:[%s3 + $0x2c8] sm:$0xff]
    %v363 = vld [vmem:[%s3 + $0x2d0] sm:$0xff]
    %v364 = vld [vmem:[%s3 + $0x2d8] sm:$0xff]
    %v365 = vld [vmem:[%s3 + $0x2e0] sm:$0xff]
    %v366 = vld [vmem:[%s3 + $0x2e8] sm:$0xff]
    %v367 = vld [vmem:[%s3 + $0x2f0] sm:$0xff]
    %v368 = vld [vmem:[%s3 + $0x2f8] sm:$0xff]
    %v369 = vld [vmem:[%s4] sm:$0x3f]
    %v371 = vperm.slane %v369, 0
    %v372 = vperm.slane %v369, 1
    %v373 = vperm.slane %v369, 2
    %v374 = vperm.slane %v369, 3
    %v375 = vperm.slane %v369, 4
    %v376 = vperm.slane %v369, 5
    %383 = vmatpush.msra.mxu0 %v363
    %384 = vmatpush.msra.mxu0 %v357
    %385 = vmatpush.msra.mxu0 %v351
    %386 = vmatpush.msra.mxu0 %v345
    %387 = vmatpush.msra.mxu0 %v339
    %388 = vmatpush.msra.mxu0 %v333
    %389 = vmatpush.msra.mxu0 %v327
    %390 = vmatpush.msra.mxu0 %v321
    %391 = vmatpush.msra.mxu0 %v315
    %392 = vmatpush.msra.mxu0 %v309
    %393 = vmatpush.msra.mxu0 %v303
    %394 = vmatpush.msra.mxu0 %v297
    %395 = vmatpush.msra.mxu0 %v291
    %396 = vmatpush.msra.mxu0 %v285
    %397 = vmatpush.msra.mxu0 %v279
    %398 = vmatpush.msra.mxu0 %v273
    %399 = vmatmul.f32.gmra.mxu0 %v271
    %v400 = vpop.f32.mrf.mxu0
    %v401 = vadd.f32 %v371, %v400
    %402 = vmatmul.f32.gmra.mxu0 %v272
    %v403 = vpop.f32.mrf.mxu0
    %v404 = vadd.f32 %v371, %v403
    %405 = vdwg.mxu0
    %406 = vmatpush.msra.mxu0 %v364
    %407 = vmatpush.msra.mxu0 %v358
    %408 = vmatpush.msra.mxu0 %v352
    %409 = vmatpush.msra.mxu0 %v346
    %410 = vmatpush.msra.mxu0 %v340
    %411 = vmatpush.msra.mxu0 %v334
    %412 = vmatpush.msra.mxu0 %v328
    %413 = vmatpush.msra.mxu0 %v322
    %414 = vmatpush.msra.mxu0 %v316
    %415 = vmatpush.msra.mxu0 %v310
    %416 = vmatpush.msra.mxu0 %v304
    %417 = vmatpush.msra.mxu0 %v298
    %418 = vmatpush.msra.mxu0 %v292
    %419 = vmatpush.msra.mxu0 %v286
    %420 = vmatpush.msra.mxu0 %v280
    %421 = vmatpush.msra.mxu0 %v274
    %422 = vmatmul.f32.gmra.mxu0 %v271
    %v423 = vpop.f32.mrf.mxu0
    %v424 = vadd.f32 %v372, %v423
    %425 = vmatmul.f32.gmra.mxu0 %v272
    %v426 = vpop.f32.mrf.mxu0
    %v427 = vadd.f32 %v372, %v426
    %428 = vdwg.mxu0
    %429 = vmatpush.msra.mxu0 %v365
    %430 = vmatpush.msra.mxu0 %v359
    %431 = vmatpush.msra.mxu0 %v353
    %432 = vmatpush.msra.mxu0 %v347
    %433 = vmatpush.msra.mxu0 %v341
    %434 = vmatpush.msra.mxu0 %v335
    %435 = vmatpush.msra.mxu0 %v329
    %436 = vmatpush.msra.mxu0 %v323
    %437 = vmatpush.msra.mxu0 %v317
    %438 = vmatpush.msra.mxu0 %v311
    %439 = vmatpush.msra.mxu0 %v305
    %440 = vmatpush.msra.mxu0 %v299
    %441 = vmatpush.msra.mxu0 %v293
    %442 = vmatpush.msra.mxu0 %v287
    %443 = vmatpush.msra.mxu0 %v281
    %444 = vmatpush.msra.mxu0 %v275
    %445 = vmatmul.f32.gmra.mxu0 %v271
    %v446 = vpop.f32.mrf.mxu0
    %v447 = vadd.f32 %v373, %v446
    %448 = vmatmul.f32.gmra.mxu0 %v272
    %v449 = vpop.f32.mrf.mxu0
    %v450 = vadd.f32 %v373, %v449
    %451 = vdwg.mxu0
    %452 = vmatpush.msra.mxu0 %v366
    %453 = vmatpush.msra.mxu0 %v360
    %454 = vmatpush.msra.mxu0 %v354
    %455 = vmatpush.msra.mxu0 %v348
    %456 = vmatpush.msra.mxu0 %v342
    %457 = vmatpush.msra.mxu0 %v336
    %458 = vmatpush.msra.mxu0 %v330
    %459 = vmatpush.msra.mxu0 %v324
    %460 = vmatpush.msra.mxu0 %v318
    %461 = vmatpush.msra.mxu0 %v312
    %462 = vmatpush.msra.mxu0 %v306
    %463 = vmatpush.msra.mxu0 %v300
    %464 = vmatpush.msra.mxu0 %v294
    %465 = vmatpush.msra.mxu0 %v288
    %466 = vmatpush.msra.mxu0 %v282
    %467 = vmatpush.msra.mxu0 %v276
    %468 = vmatmul.f32.gmra.mxu0 %v271
    %v469 = vpop.f32.mrf.mxu0
    %v470 = vadd.f32 %v374, %v469
    %471 = vmatmul.f32.gmra.mxu0 %v272
    %v472 = vpop.f32.mrf.mxu0
    %v473 = vadd.f32 %v374, %v472
    %474 = vdwg.mxu0
    %475 = vmatpush.msra.mxu0 %v367
    %476 = vmatpush.msra.mxu0 %v361
    %477 = vmatpush.msra.mxu0 %v355
    %478 = vmatpush.msra.mxu0 %v349
    %479 = vmatpush.msra.mxu0 %v343
    %480 = vmatpush.msra.mxu0 %v337
    %481 = vmatpush.msra.mxu0 %v331
    %482 = vmatpush.msra.mxu0 %v325
    %483 = vmatpush.msra.mxu0 %v319
    %484 = vmatpush.msra.mxu0 %v313
    %485 = vmatpush.msra.mxu0 %v307
    %486 = vmatpush.msra.mxu0 %v301
    %487 = vmatpush.msra.mxu0 %v295
    %488 = vmatpush.msra.mxu0 %v289
    %489 = vmatpush.msra.mxu0 %v283
    %490 = vmatpush.msra.mxu0 %v277
    %491 = vmatmul.f32.gmra.mxu0 %v271
    %v492 = vpop.f32.mrf.mxu0
    %v493 = vadd.f32 %v375, %v492
    %494 = vmatmul.f32.gmra.mxu0 %v272
    %v495 = vpop.f32.mrf.mxu0
    %v496 = vadd.f32 %v375, %v495
    %497 = vdwg.mxu0
    %498 = vmatpush.msra.mxu0 %v368
    %499 = vmatpush.msra.mxu0 %v362
    %500 = vmatpush.msra.mxu0 %v356
    %501 = vmatpush.msra.mxu0 %v350
    %502 = vmatpush.msra.mxu0 %v344
    %503 = vmatpush.msra.mxu0 %v338
    %504 = vmatpush.msra.mxu0 %v332
    %505 = vmatpush.msra.mxu0 %v326
    %506 = vmatpush.msra.mxu0 %v320
    %507 = vmatpush.msra.mxu0 %v314
    %508 = vmatpush.msra.mxu0 %v308
    %509 = vmatpush.msra.mxu0 %v302
    %510 = vmatpush.msra.mxu0 %v296
    %511 = vmatpush.msra.mxu0 %v290
    %512 = vmatpush.msra.mxu0 %v284
    %513 = vmatpush.msra.mxu0 %v278
    %514 = vmatmul.f32.gmra.mxu0 %v271
    %v515 = vpop.f32.mrf.mxu0
    %v516 = vadd.f32 %v376, %v515
    %517 = vmatmul.f32.gmra.mxu0 %v272
    %v518 = vpop.f32.mrf.mxu0
    %v519 = vadd.f32 %v376, %v518
    %520 = vdwg.mxu0
    %v521 = vadd.f32 %v21, %v401
    %v522 = vadd.f32 %v22, %v424
    %v523 = vadd.f32 %v23, %v447
    %v524 = vadd.f32 %v24, %v470
    %v525 = vadd.f32 %v25, %v493
    %v526 = vadd.f32 %v26, %v516
    %v527 = vadd.f32 %v27, %v404
    %v528 = vadd.f32 %v28, %v427
    %v529 = vadd.f32 %v29, %v450
    %v530 = vadd.f32 %v30, %v473
    %v531 = vadd.f32 %v31, %v496
    %v532 = vadd.f32 %v32, %v519
    %533 = vst [vmem:[#allocation2] sm:$0xff] %v521
    %534 = vst [vmem:[#allocation2 + $0x8] sm:$0xff] %v522
    %535 = vst [vmem:[#allocation2 + $0x10] sm:$0xff] %v523
    %536 = vst [vmem:[#allocation2 + $0x18] sm:$0xff] %v524
    %537 = vst [vmem:[#allocation2 + $0x20] sm:$0xff] %v525
    %538 = vst [vmem:[#allocation2 + $0x28] sm:$0xff] %v526
    %539 = vst [vmem:[#allocation2 + $0x30] sm:$0xff] %v527
    %540 = vst [vmem:[#allocation2 + $0x38] sm:$0xff] %v528
    %541 = vst [vmem:[#allocation2 + $0x40] sm:$0xff] %v529
    %542 = vst [vmem:[#allocation2 + $0x48] sm:$0xff] %v530
    %543 = vst [vmem:[#allocation2 + $0x50] sm:$0xff] %v531
    %544 = vst [vmem:[#allocation2 + $0x58] sm:$0xff] %v532
    // Predicated region
    $region22: #{adapter_forward.1} parent=1 // pred_check
      _
    $region23: #{adapter_forward.1} parent=1 // pred_check_branch
      %546 = sbr.rel (0) target = $region25
    $region24: #{adapter_forward.1} parent=1 // pred_region
      %548 = vsyncadd [#allocation3], 0
      %s549 = sshll.u32 [#allocation2], 4
      %s550 = int_to_ptr.vmem [resolvable:$true] %s549
      %s551 = sshll.u32 %s5, 4
      %s552 = int_to_ptr.hbm [resolvable:$true] %s551
      %557 = dma.vmem_to_hbm [thread:$0]  %s550, 1536, %s552, [#allocation3], 768, 768, 48
    $region25: #{adapter_forward.1} parent=1 // pred_fallthru
      _
    // Predicated region
    $region26: #{adapter_forward.1} parent=1 // pred_check
      _
    $region27: #{adapter_forward.1} parent=1 // pred_check_branch
      %559 = sbr.rel (0) target = $region29
    $region28: #{adapter_forward.1} parent=1 // pred_region
      %561 = dma.done [#allocation3], 1536
    $region29: #{adapter_forward.1} parent=1 // pred_fallthru
      _
    %562 = vsyncpa [#allocation3], 1

</llo_original>
